<compile_context>
chip_gen: v7x
topology: tpu7x:2x2x1
jax: 0.10.0
libtpu: 0.0.40
codegen_flags: <defaults>
</compile_context>

<pallas_src>
import jax
import jax.numpy as jnp
from jax.experimental import pallas as pl
from jax.experimental.pallas import tpu as pltpu


def _scale_kernel(scale_ref, x_ref, o_ref):
    # scale lives in SMEM; the dtype cast is fused here so integer inputs do
    # not need a separate full-HBM-pass astype in the wrapper.  For float
    # inputs this is a single vmul per vreg.
    s = scale_ref[0].astype(o_ref.dtype)
    o_ref[...] = x_ref[...].astype(o_ref.dtype) * s


def _round_up(v, m):
    return ((v + m - 1) // m) * m


def scale_forward(x, scale, *, donate=False):
    """y = x * scale, computed in a Pallas TPU kernel.

    x: arbitrary-shaped array (e.g. NCHW).  scale: Python float.
    Set donate=True only if x's buffer is donated (reuses the HBM allocation).
    """
    orig_shape = x.shape
    scale = float(scale)

    # Torch semantics: float tensors keep their dtype; int/bool tensors promote
    # to the default float dtype.  Pin to float32 (never f64, even with x64 on).
    if jnp.issubdtype(x.dtype, jnp.floating):
        out_dtype = x.dtype
    else:
        out_dtype = jnp.float32

    n = x.size
    lane = 1024 if (n > 0 and n % 1024 == 0) else 128

    if n == 0 or n % lane != 0:
        # Ragged / empty fallback: one fused XLA pass (read + write once),
        # ~3x cheaper than pad + kernel + slice-back.
        return (x.astype(out_dtype) * scale).reshape(orig_shape)

    rows = n // lane
    x2d = x.reshape(rows, lane)  # free metadata reshape, no HBM traffic

    in_itemsize = jnp.dtype(x2d.dtype).itemsize
    out_itemsize = jnp.dtype(out_dtype).itemsize

    # Block sizing: target ~16 MiB of HBM traffic (in + out) per grid step.
    # Double-buffered footprint = 2*(in_block + out_block) ~ 32-40 MiB, which
    # fits v7x's 64 MiB per-TC VMEM and v5e/v6e's 128 MiB with headroom.
    row_align = 32  # clean sublane packing down to 1-byte dtypes (and 8/16 too)
    target_step_bytes = 16 * 1024 * 1024
    target_rows = max(
        row_align,
        (target_step_bytes // (lane * (in_itemsize + out_itemsize)))
        // row_align * row_align,
    )
    # Keep >= ~4 grid blocks when the tensor is big enough so the ("parallel",)
    # axis can shard across v7x's 2 TensorCores (no-op on v5e/v6e).
    split_rows = max(row_align, _round_up(pl.cdiv(rows, 4), row_align))
    row_tile = min(target_rows, split_rows, rows)

    grid = (pl.cdiv(rows, row_tile),)
    in_block_bytes = row_tile * lane * in_itemsize
    out_block_bytes = row_tile * lane * out_itemsize

    scale_arr = jnp.asarray([scale], dtype=jnp.float32)

    aliases = {}
    if donate and out_dtype == x2d.dtype:
        aliases = {1: 0}  # x2d is operand #1 (the SMEM scale scalar is #0)

    y2d = pl.pallas_call(
        _scale_kernel,
        out_shape=jax.ShapeDtypeStruct((rows, lane), out_dtype),
        grid_spec=pltpu.PrefetchScalarGridSpec(
            num_scalar_prefetch=0,
            grid=grid,
            in_specs=[
                pl.BlockSpec(memory_space=pltpu.MemorySpace.SMEM),  # scale
                pl.BlockSpec((row_tile, lane), lambda i: (i, 0)),   # x tile
            ],
            out_specs=pl.BlockSpec((row_tile, lane), lambda i: (i, 0)),
        ),
        compiler_params=pltpu.CompilerParams(
            dimension_semantics=("parallel",),
            # in + out, each double-buffered, plus Mosaic scratch headroom.
            vmem_limit_bytes=max(
                2 * (in_block_bytes + out_block_bytes) + (2 << 20), 16 << 20
            ),
        ),
        cost_estimate=pl.CostEstimate(
            flops=rows * lane,
            transcendentals=0,
            bytes_accessed=rows * lane * (in_itemsize + out_itemsize),
        ),
        input_output_aliases=aliases,
    )(scale_arr, x2d)

    return y2d.reshape(orig_shape)


if __name__ == "__main__":
    key = jax.random.PRNGKey(0)
    # Small NCHW input consistent with a typical conv feature map.
    x = jax.random.normal(key, (2, 4, 16, 16), dtype=jnp.float32)
    scale = 0.5  # module __init__ argument

    y = scale_forward(x, scale)
    y = jax.block_until_ready(y)

    # Correctness check against the reference semantics (x * scale).
    ref = x * scale
    assert y.shape == x.shape and y.dtype == x.dtype
    assert jnp.allclose(y, ref, atol=1e-6, rtol=1e-6)

    print("KERNEL_OK")
</pallas_src>

<mosaic_0001>
module attributes {stable_mosaic.version = 11 : i64} {
  func.func @_scale_kernel(%arg0: i32, %arg1: memref<1xf32, #tpu.memory_space<smem>>, %arg2: memref<2x1024xf32, #tpu.memory_space<vmem>>, %arg3: memref<2x1024xf32, #tpu.memory_space<vmem>>) attributes {dimension_semantics = [#tpu.dimension_semantics<parallel>], iteration_bounds = array<i64: 1>, scalar_prefetch = 0 : i64, scratch_operands = 0 : i64, tpu.core_type = #tpu.core_type<tc>, window_params = [{transform_indices = @transform_0, window_bounds = array<i64: 1>}, {transform_indices = @transform_1, window_bounds = array<i64: 2, 1024>}, {transform_indices = @transform_2, window_bounds = array<i64: 2, 1024>}]} {
    %c0 = arith.constant 0 : index
    %0 = memref.load %arg1[%c0] : memref<1xf32, #tpu.memory_space<smem>>
    %c0_0 = arith.constant 0 : index
    %c0_1 = arith.constant 0 : index
    %1 = vector.load %arg2[%c0_0, %c0_1] : memref<2x1024xf32, #tpu.memory_space<vmem>>, vector<2x1024xf32>
    %2 = vector.broadcast %0 : f32 to vector<2x1024xf32>
    %3 = arith.mulf %1, %2 : vector<2x1024xf32>
    %c0_2 = arith.constant 0 : index
    %c0_3 = arith.constant 0 : index
    %4 = vector.load %arg3[%c0_2, %c0_3] : memref<2x1024xf32, #tpu.memory_space<vmem>>, vector<2x1024xf32>
    tpu.vector_store %arg3[%c0_2, %c0_3], %3 {strides = array<i32>} : memref<2x1024xf32, #tpu.memory_space<vmem>>, vector<2x1024xf32>,
    return
  }
  func.func @transform_0(%arg0: i32) -> i32 {
    %c0_i32 = arith.constant 0 : i32
    %c0_i32_0 = arith.constant 0 : i32
    return %c0_i32 : i32
  }
  func.func @transform_1(%arg0: i32) -> (i32, i32) {
    %c0_i32 = arith.constant 0 : i32
    %c0_i32_0 = arith.constant 0 : i32
    return %arg0, %c0_i32 : i32, i32
  }
  func.func @transform_2(%arg0: i32) -> (i32, i32) {
    %c0_i32 = arith.constant 0 : i32
    %c0_i32_0 = arith.constant 0 : i32
    return %arg0, %c0_i32 : i32, i32
  }
}

</mosaic_0001>

<llo_original>
// kernel: tpu_custom_call.1
$region0: #{tpu_custom_call.1}
  #allocation0 [shape = 'u32[]', space=smem, size = 0x4, offset = 0x4, fixed_abs, tag = 'smem constant byte address 0x4 - core index']
  #allocation1 [shape = 'u32[144,128]{1,0:T(1,128)}', space=vmem, size = 0x12000, scoped, tag = 'internal scratch']
  #allocation2 [shape = 'f32[1]{0:T(128)S(6)}', space=smem, size = 0x200, scoped, tag = 'scoped memory for tpu_custom_call.1']
  %s0 = inlined_call_operand.<no memory space> [shape: f32[1], index: 0, kind: input, shape index: {}]
  %s1 = inlined_call_operand.hbm [shape: f32[2,1024], index: 1, kind: input, shape index: {}]
  %s2 = inlined_call_operand.hbm [shape: f32[2,1024], index: 2, kind: output, shape index: {}]
  %s3 = sld [smem:[#allocation0]]
  $region22: #{tpu_custom_call.1} parent=0
    _
  %s5 = ssub.s32 1, %s3
  %s6 = scalar_select 0, %s5, %s3
  %7 = sst [smem:[#allocation2]] %s0
  $region1: #{tpu_custom_call.1} parent=0
    #allocation3 [shape = 'u8[8192]{0}', space=vmem, size = 0x2000, scoped, tag = 'input window, operand 1, single buffered']
    #allocation4 [shape = 's32[1]{0}', space=sflag, size = 0x4, scoped, tag = 'scoped memory for tpu_custom_call.1']
    #allocation5 [shape = 's32[1]{0}', space=sflag, size = 0x4, scoped, tag = 'scoped memory for tpu_custom_call.1']
    #allocation6 [shape = 'u8[8192]{0}', space=vmem, size = 0x2000, scoped, tag = 'output window, operand 0, single buffered']
    %8 = vsyncpa [#allocation4], 0
    %9 = vsyncpa [#allocation5], 0
    // Predicated region
    $region2: #{tpu_custom_call.1} parent=1 // pred_check
      _
    $region3: #{tpu_custom_call.1} parent=1 // pred_check_branch
      %11 = sbr.rel (0) target = $region5
    $region4: #{tpu_custom_call.1} parent=1 // pred_region
      _
    $region5: #{tpu_custom_call.1} parent=1 // pred_fallthru
      _
    // Predicated region
    $region6: #{tpu_custom_call.1} parent=1 // pred_check
      _
    $region7: #{tpu_custom_call.1} parent=1 // pred_check_branch
      %13 = sbr.rel (0) target = $region9
    $region8: #{tpu_custom_call.1} parent=1 // pred_region
      %s15 = ssub.s32 256, 256
      %16 = vsyncadd [#allocation4], %s15
      %s18 = sshll.u32 [#allocation3], 4
      %s19 = int_to_ptr.vmem [resolvable:$true] %s18
      %21 = dma.hbm_to_vmem [thread:$0]  %s1, 256, %s19, [#allocation4]
    $region9: #{tpu_custom_call.1} parent=1 // pred_fallthru
      _
    // Predicated region
    $region10: #{tpu_custom_call.1} parent=1 // pred_check
      _
    $region11: #{tpu_custom_call.1} parent=1 // pred_check_branch
      %23 = sbr.rel (0) target = $region13
    $region12: #{tpu_custom_call.1} parent=1 // pred_region
      %24 = dma.done [#allocation4], 256
    $region13: #{tpu_custom_call.1} parent=1 // pred_fallthru
      _
    %s25 = sld [smem:[#allocation2]]
    %v26 = vld [vmem:[#allocation3] sm:$0xff]
    %v27 = vld [vmem:[#allocation3 + $0x8] sm:$0xff]
    %v28 = vstv %s25
    %v29 = vmul.f32 %v26, %v28
    %v30 = vmul.f32 %v27, %v28
    %31 = vst [vmem:[#allocation6] sm:$0xff] %v29
    %32 = vst [vmem:[#allocation6 + $0x8] sm:$0xff] %v30
    // Predicated region
    $region14: #{tpu_custom_call.1} parent=1 // pred_check
      _
    $region15: #{tpu_custom_call.1} parent=1 // pred_check_branch
      %34 = sbr.rel (0) target = $region17
    $region16: #{tpu_custom_call.1} parent=1 // pred_region
      %s36 = ssub.s32 256, 256
      %37 = vsyncadd [#allocation5], %s36
      %s39 = sshll.u32 [#allocation6], 4
      %s40 = int_to_ptr.vmem [resolvable:$true] %s39
      %42 = dma.vmem_to_hbm [thread:$0]  %s40, 256, %s2, [#allocation5]
    $region17: #{tpu_custom_call.1} parent=1 // pred_fallthru
      _
    // Predicated region
    $region18: #{tpu_custom_call.1} parent=1 // pred_check
      _
    $region19: #{tpu_custom_call.1} parent=1 // pred_check_branch
      %44 = sbr.rel (0) target = $region21
    $region20: #{tpu_custom_call.1} parent=1 // pred_region
      %45 = dma.done [#allocation5], 256
    $region21: #{tpu_custom_call.1} parent=1 // pred_fallthru
      _
    %46 = vsyncpa [#allocation4], 1
    %47 = vsyncpa [#allocation5], 1

</llo_original>
